<compile_context>
chip_gen: v6e
topology: v6e:2x2x1
jax: 0.10.0
libtpu: 0.0.40
codegen_flags: <defaults>
</compile_context>

<pallas_src>
import functools

import jax
import jax.numpy as jnp
from jax.experimental import pallas as pl
from jax.experimental.pallas import tpu as pltpu


def _round_up(x, m):
    return ((x + m - 1) // m) * m


# ----------------------------------------------------------------------------
# Per-generation VMEM planning (stage budget for bf16 A+B tiles, scoped limit)
# ----------------------------------------------------------------------------

_TM_MAX = 256          # max rows per output tile
_TN_MAX = 512          # max cols per output tile


def _device_vmem_plan():
    try:
        kind = jax.devices()[0].device_kind.lower()
    except Exception:
        kind = ""
    if "v6" in kind:                              # 128 MiB VMEM, 32 MiB scoped default
        return 10 * 2 ** 20, 64 * 2 ** 20, False
    if "tpu7" in kind or "v7" in kind:            # 64 MiB VMEM per TC, 2 TCs
        return 8 * 2 ** 20, 48 * 2 ** 20, True
    if "v5" in kind:                              # v5e: 128 MiB VMEM, 16 MiB scoped default
        return 5 * 2 ** 20, 48 * 2 ** 20, False
    return 5 * 2 ** 20, None, False               # unknown: conservative, keep default limit


_STAGE_BUDGET_BYTES, _VMEM_LIMIT_BYTES, _TWO_TC = _device_vmem_plan()


def _plan_tiles(K, N):
    """Deterministic (tk, tn, Kp, Np) from true K, N — shared by prepare_params and forward."""
    tn = min(_round_up(N, 128), _TN_MAX)
    Kp_full = _round_up(K, 128)
    stage_row_bytes = (_TM_MAX + tn) * 2                      # bf16 A+B bytes per K row
    max_tk = max(128, (_STAGE_BUDGET_BYTES // stage_row_bytes) // 128 * 128)
    if Kp_full <= max_tk:
        tk = Kp_full                                          # single K step
    else:
        nk = -(-Kp_full // max_tk)                            # ceil
        tk = _round_up(-(-K // nk), 128)                      # divisor-fitting: Kp ~= K
    Kp = _round_up(K, tk)
    Np = _round_up(N, tn)
    return tk, tn, Kp, Np


# ----------------------------------------------------------------------------
# Pallas kernels: matmul (+ bias + activation epilogue)
# ----------------------------------------------------------------------------

def _apply_act(r, act):
    if act == "relu":
        r = jnp.maximum(r, 0.0)
    elif act == "sigmoid":
        r = 1.0 / (1.0 + jnp.exp(-r))                         # exact (review concern)
    elif act == "hswish":
        r = r * jnp.clip(r + 3.0, 0.0, 6.0) * (1.0 / 6.0)
    return r


def _matmul_single_kernel(a_ref, b_ref, bias_ref, o_ref, *, act):
    # single K step: no scratch, no pl.when
    r = jnp.dot(a_ref[...], b_ref[...], preferred_element_type=jnp.float32)
    r = r + bias_ref[...]
    o_ref[...] = _apply_act(r, act).astype(o_ref.dtype)


def _matmul_acc_kernel(a_ref, b_ref, bias_ref, o_ref, acc_ref, *, act, nk):
    k = pl.program_id(2)

    @pl.when(k == 0)
    def _():
        acc_ref[...] = jnp.zeros_like(acc_ref)

    acc_ref[...] += jnp.dot(a_ref[...], b_ref[...], preferred_element_type=jnp.float32)

    @pl.when(k == nk - 1)
    def _():
        r = acc_ref[...] + bias_ref[...]
        o_ref[...] = _apply_act(r, act).astype(o_ref.dtype)


@functools.lru_cache(maxsize=None)
def _matmul_fn(Mp, Kp, Np, tm, tk, tn, act, out_dtype):
    nk = Kp // tk
    if nk == 1:
        return pl.pallas_call(
            functools.partial(_matmul_single_kernel, act=act),
            out_shape=jax.ShapeDtypeStruct((Mp, Np), out_dtype),
            grid_spec=pltpu.PrefetchScalarGridSpec(
                num_scalar_prefetch=0,
                grid=(Mp // tm, Np // tn),
                in_specs=[
                    pl.BlockSpec((tm, tk), lambda i, j: (i, 0)),
                    pl.BlockSpec((tk, tn), lambda i, j: (0, j)),
                    pl.BlockSpec((1, tn), lambda i, j: (0, j)),
                ],
                out_specs=pl.BlockSpec((tm, tn), lambda i, j: (i, j)),
            ),
            compiler_params=pltpu.CompilerParams(
                dimension_semantics=("parallel", "parallel"),
                vmem_limit_bytes=_VMEM_LIMIT_BYTES),
        )
    return pl.pallas_call(
        functools.partial(_matmul_acc_kernel, act=act, nk=nk),
        out_shape=jax.ShapeDtypeStruct((Mp, Np), out_dtype),
        grid_spec=pltpu.PrefetchScalarGridSpec(
            num_scalar_prefetch=0,
            grid=(Mp // tm, Np // tn, nk),
            in_specs=[
                pl.BlockSpec((tm, tk), lambda i, j, k: (i, k)),
                pl.BlockSpec((tk, tn), lambda i, j, k: (k, j)),
                pl.BlockSpec((1, tn), lambda i, j, k: (0, j)),
            ],
            out_specs=pl.BlockSpec((tm, tn), lambda i, j, k: (i, j)),
            scratch_shapes=[pltpu.VMEM((tm, tn), jnp.float32)],
        ),
        compiler_params=pltpu.CompilerParams(
            dimension_semantics=("parallel", "parallel", "arbitrary"),
            vmem_limit_bytes=_VMEM_LIMIT_BYTES),
    )


def _prepare_weight(wm):
    """One-time: pad a (K, N) weight matrix to its tile-aligned (Kp, Np) bf16 layout."""
    K, N = wm.shape
    tk, tn, Kp, Np = _plan_tiles(K, N)
    return jnp.pad(wm.astype(jnp.bfloat16), ((0, Kp - K), (0, Np - N)))


def matmul_bias_act(a, w_padded, bias, act="none", out_dtype=jnp.float32):
    """act(a @ W + bias).  a:(M,K); w_padded: pre-padded (Kp,Np) bf16; bias:(N,) fp32."""
    M, K = a.shape
    N = bias.shape[0]
    tk, tn, Kp, Np = _plan_tiles(K, N)
    assert w_padded.shape == (Kp, Np), (w_padded.shape, (Kp, Np))
    tm = min(_round_up(M, 8), _TM_MAX)
    Mp = _round_up(M, tm)
    # On 2-TC chips, split a 1x1 grid along N (keeps MXU row occupancy full, unlike an M split).
    if _TWO_TC and Mp // tm == 1 and Np // tn == 1 and tn >= 256:
        tn //= 2
    a_p = a.astype(jnp.bfloat16)
    if Mp != M or Kp != K:
        a_p = jnp.pad(a_p, ((0, Mp - M), (0, Kp - K)))
    bias_p = bias.astype(jnp.float32).reshape(1, N)
    if Np != N:
        bias_p = jnp.pad(bias_p, ((0, 0), (0, Np - N)))
    out = _matmul_fn(Mp, Kp, Np, tm, tk, tn, act, out_dtype)(a_p, w_padded, bias_p)
    return out[:M, :N]


# ----------------------------------------------------------------------------
# Pallas kernels: elementwise / reductions (row-tiled, VMEM-budget-aware grids)
# ----------------------------------------------------------------------------

_EW_BUDGET_BYTES = 6 * 2 ** 20


def _add_relu_kernel(x_ref, y_ref, o_ref):
    s = x_ref[...].astype(jnp.float32) + y_ref[...].astype(jnp.float32)
    o_ref[...] = jnp.maximum(s, 0.0).astype(o_ref.dtype)


@functools.lru_cache(maxsize=None)
def _add_relu_fn(Rp, C, tr, out_dtype):
    return pl.pallas_call(
        _add_relu_kernel,
        out_shape=jax.ShapeDtypeStruct((Rp, C), out_dtype),
        grid_spec=pltpu.PrefetchScalarGridSpec(
            num_scalar_prefetch=0, grid=(Rp // tr,),
            in_specs=[pl.BlockSpec((tr, C), lambda i: (i, 0)),
                      pl.BlockSpec((tr, C), lambda i: (i, 0))],
            out_specs=pl.BlockSpec((tr, C), lambda i: (i, 0))),
        compiler_params=pltpu.CompilerParams(dimension_semantics=("parallel",)),
    )


def add_relu(x, y):
    R, C = x.shape
    row_bytes = C * x.dtype.itemsize
    # 3 arrays, double-buffered: 6 live blocks per stage.
    tr_cap = max(8, (_EW_BUDGET_BYTES // (6 * row_bytes)) // 8 * 8)
    tr = min(_round_up(R, 8), min(tr_cap, 1024))
    Rp = _round_up(R, tr)
    xp = jnp.pad(x, ((0, Rp - R), (0, 0)))
    yp = jnp.pad(y, ((0, Rp - R), (0, 0)))
    return _add_relu_fn(Rp, C, tr, x.dtype)(xp, yp)[:R]


def _gem_kernel(x_ref, o_ref, *, p, eps):
    x = jnp.maximum(x_ref[...].astype(jnp.float32), eps)   # (tr, S, C), strictly positive
    xp = jnp.exp(p * jnp.log(x))                            # x ** p
    m = jnp.mean(xp, axis=1)
    o_ref[...] = jnp.exp(jnp.log(m) * (1.0 / p))


@functools.lru_cache(maxsize=None)
def _gem_fn(Np_, S, C, tr, p, eps):
    return pl.pallas_call(
        functools.partial(_gem_kernel, p=p, eps=eps),
        out_shape=jax.ShapeDtypeStruct((Np_, C), jnp.float32),
        grid_spec=pltpu.PrefetchScalarGridSpec(
            num_scalar_prefetch=0, grid=(Np_ // tr,),
            in_specs=[pl.BlockSpec((tr, S, C), lambda i: (i, 0, 0))],
            out_specs=pl.BlockSpec((tr, C), lambda i: (i, 0))),
        compiler_params=pltpu.CompilerParams(dimension_semantics=("parallel",)),
    )


_GEM_P = 3.0
_GEM_EPS = 1e-6


def gem_pool(x):
    N, H, W, C = x.shape
    S = H * W
    row_bytes = S * C * x.dtype.itemsize + C * 4
    tr_cap = max(8, (_EW_BUDGET_BYTES // (2 * row_bytes)) // 8 * 8)
    tr = min(_round_up(N, 8), min(tr_cap, 512))
    Np_ = _round_up(N, tr)
    xr = jnp.pad(x.reshape(N, S, C), ((0, Np_ - N), (0, 0), (0, 0)))
    return _gem_fn(Np_, S, C, tr, float(_GEM_P), float(_GEM_EPS))(xr)[:N]


# ----------------------------------------------------------------------------
# Layer wrappers (glue in plain JAX under the outer jit; matmul compute in Pallas)
# ----------------------------------------------------------------------------

def conv2d(x, wm, bias, *, ksize=1, stride=1, pad=0, act="none", out_dtype=jnp.bfloat16):
    """x: (N,H,W,Cin); wm: pre-padded bf16 im2col matrix (BN folded); bias: (Cout,) fp32."""
    N, H, W, Cin = x.shape
    KH = KW = ksize
    Cout = bias.shape[0]
    Ho = (H + 2 * pad - KH) // stride + 1
    Wo = (W + 2 * pad - KW) // stride + 1

    if KH == 1 and KW == 1 and pad == 0:
        patches = x[:, ::stride, ::stride, :].reshape(N * Ho * Wo, Cin)
    else:
        # TODO(synk): replace im2col materialization with a tap-grid matmul that DMAs shifted
        #             windows straight from the padded NHWC tensor (saves ~KH*KW x HBM traffic
        #             at realistic resolutions).
        xp = jnp.pad(x, ((0, 0), (pad, pad), (pad, pad), (0, 0)))
        cols = []
        for kh in range(KH):
            for kw in range(KW):
                cols.append(xp[:, kh:kh + (Ho - 1) * stride + 1:stride,
                               kw:kw + (Wo - 1) * stride + 1:stride, :])
        patches = jnp.concatenate(cols, axis=-1).reshape(N * Ho * Wo, KH * KW * Cin)

    out = matmul_bias_act(patches, wm, bias, act=act, out_dtype=out_dtype)
    return out.reshape(N, Ho, Wo, Cout)


def maxpool3x3_s2(x):
    """MaxPool2d(kernel=3, stride=2, padding=1) on NHWC as a fused max tree (no 9x stack)."""
    N, H, W, C = x.shape
    pad, k, s = 1, 3, 2
    Ho = (H + 2 * pad - k) // s + 1
    Wo = (W + 2 * pad - k) // s + 1
    xp = jnp.pad(x, ((0, 0), (pad, pad), (pad, pad), (0, 0)), constant_values=-jnp.inf)
    out = None
    for kh in range(k):
        for kw in range(k):
            sl = xp[:, kh:kh + (Ho - 1) * s + 1:s, kw:kw + (Wo - 1) * s + 1:s, :]
            out = sl if out is None else jnp.maximum(out, sl)
    return out


def bottleneck(x, blk, stride):
    identity = x
    out = conv2d(x, blk["c1_wm"], blk["c1_b"], ksize=1, stride=1, pad=0, act="relu")
    out = conv2d(out, blk["c2_wm"], blk["c2_b"], ksize=3, stride=stride, pad=1, act="relu")
    out = conv2d(out, blk["c3_wm"], blk["c3_b"], ksize=1, stride=1, pad=0, act="none")
    if "down_wm" in blk:
        identity = conv2d(x, blk["down_wm"], blk["down_b"], ksize=1, stride=stride,
                          pad=0, act="none")
    N, H, W, C = out.shape
    fused = add_relu(out.reshape(N * H * W, C), identity.reshape(N * H * W, C))
    return fused.reshape(N, H, W, C)


def coord_att(x, p):
    """Coordinate Attention on NHWC (channels = 2048, mip = 64). Matmuls in Pallas; the tiny
    directional means and the broadcast gating are plain jnp (XLA fuses them)."""
    N, H, W, C = x.shape
    mip = p["conv1_b"].shape[0]
    xh = jnp.mean(x.astype(jnp.float32), axis=2)                   # (N,H,C)  mean over W
    xw = jnp.mean(x.astype(jnp.float32), axis=1)                   # (N,W,C)  mean over H
    y = jnp.concatenate([xh, xw], axis=1).reshape(N * (H + W), C)
    y = matmul_bias_act(y, p["conv1_wm"], p["conv1_b"], act="hswish", out_dtype=jnp.bfloat16)
    y = y.reshape(N, H + W, mip)
    yh = y[:, :H, :].reshape(N * H, mip)
    yw = y[:, H:, :].reshape(N * W, mip)
    a_h = matmul_bias_act(yh, p["convh_wm"], p["convh_b"], act="sigmoid",
                          out_dtype=jnp.bfloat16).reshape(N, H, 1, C)
    a_w = matmul_bias_act(yw, p["convw_wm"], p["convw_b"], act="sigmoid",
                          out_dtype=jnp.bfloat16).reshape(N, 1, W, C)
    return (x * a_h * a_w).astype(x.dtype)


# ----------------------------------------------------------------------------
# Parameter construction (raw, PyTorch-style) + one-time preparation
# ----------------------------------------------------------------------------

class _Rng:
    def __init__(self, seed):
        self.key = jax.random.PRNGKey(seed)

    def next(self):
        self.key, sub = jax.random.split(self.key)
        return sub


def _conv_w(rng, cout, cin, kh, kw):
    fan_in = cin * kh * kw
    return (jax.random.normal(rng.next(), (cout, cin, kh, kw), jnp.float32)
            * (fan_in ** -0.5))


def _bn_params(rng, c):
    return {
        "gamma": 1.0 + 0.1 * jax.random.normal(rng.next(), (c,), jnp.float32),
        "beta": 0.1 * jax.random.normal(rng.next(), (c,), jnp.float32),
        "mean": 0.1 * jax.random.normal(rng.next(), (c,), jnp.float32),
        "var": 0.5 + jax.random.uniform(rng.next(), (c,), jnp.float32),
        "eps": 1e-5,
    }


_LAYER_CFG = [(64, 3, 1), (128, 4, 2), (256, 6, 2), (512, 3, 1)]   # ResNet50, last_stride=1
_INS4_IDX = _LAYER_CFG[3][1] - 1                                    # insert_layers=[0,0,0,1]
_EXPANSION = 4


def make_params(num_classes=10, seed=0):
    rng = _Rng(seed)
    p = {}
    p["conv1_w"] = _conv_w(rng, 64, 3, 7, 7)
    p["bn1"] = _bn_params(rng, 64)
    inplanes = 64
    layers = []
    for planes, blocks, stride in _LAYER_CFG:
        blks = []
        for bi in range(blocks):
            s = stride if bi == 0 else 1
            blk = {
                "conv1_w": _conv_w(rng, planes, inplanes, 1, 1),
                "bn1": _bn_params(rng, planes),
                "conv2_w": _conv_w(rng, planes, planes, 3, 3),
                "bn2": _bn_params(rng, planes),
                "conv3_w": _conv_w(rng, planes * _EXPANSION, planes, 1, 1),
                "bn3": _bn_params(rng, planes * _EXPANSION),
            }
            if s != 1 or inplanes != planes * _EXPANSION:
                blk["down_w"] = _conv_w(rng, planes * _EXPANSION, inplanes, 1, 1)
                blk["down_bn"] = _bn_params(rng, planes * _EXPANSION)
            blks.append(blk)
            inplanes = planes * _EXPANSION
        layers.append(blks)
    p["layers"] = layers

    # CoordAtt(2048): mip = max(8, 2048 // 32) = 64
    C = inplanes
    mip = max(8, C // 32)
    p["coordatt"] = {
        "conv1_w": _conv_w(rng, mip, C, 1, 1),
        "conv1_b": 0.02 * jax.random.normal(rng.next(), (mip,), jnp.float32),
        "bn1": _bn_params(rng, mip),
        "convh_w": _conv_w(rng, C, mip, 1, 1),
        "convh_b": 0.02 * jax.random.normal(rng.next(), (C,), jnp.float32),
        "convw_w": _conv_w(rng, C, mip, 1, 1),
        "convw_b": 0.02 * jax.random.normal(rng.next(), (C,), jnp.float32),
    }

    # head params (declared by __init__, unused on the eval forward path)
    p["head_bn"] = _bn_params(rng, C)
    p["classifier_w"] = 0.001 * jax.random.normal(rng.next(), (num_classes, C), jnp.float32)
    p["classifier_b"] = jnp.zeros((num_classes,), jnp.float32)
    return p


def _fold_conv(w, bn=None, bias=None):
    """Fold eval-mode BN into a conv; return (tile-padded (Kp,Np) bf16 matrix, (Cout,) fp32 bias)."""
    Cout, Cin, KH, KW = w.shape
    if bn is not None:
        scale = bn["gamma"] * jax.lax.rsqrt(bn["var"] + bn["eps"])
        shift = bn["beta"] - bn["mean"] * scale
        w = w * scale[:, None, None, None]
        bias = shift if bias is None else bias * scale + shift
    elif bias is None:
        bias = jnp.zeros((Cout,), jnp.float32)
    wm = jnp.transpose(w, (2, 3, 1, 0)).reshape(KH * KW * Cin, Cout)
    return _prepare_weight(wm), bias.astype(jnp.float32)


def prepare_params(raw):
    """One-time: fold BN, build tile-padded bf16 im2col weight matrices (arrays only)."""
    p = {}
    p["stem_wm"], p["stem_b"] = _fold_conv(raw["conv1_w"], bn=raw["bn1"])
    layers = []
    for blks in raw["layers"]:
        out_blks = []
        for blk in blks:
            nb = {}
            nb["c1_wm"], nb["c1_b"] = _fold_conv(blk["conv1_w"], bn=blk["bn1"])
            nb["c2_wm"], nb["c2_b"] = _fold_conv(blk["conv2_w"], bn=blk["bn2"])
            nb["c3_wm"], nb["c3_b"] = _fold_conv(blk["conv3_w"], bn=blk["bn3"])
            if "down_w" in blk:
                nb["down_wm"], nb["down_b"] = _fold_conv(blk["down_w"], bn=blk["down_bn"])
            out_blks.append(nb)
        layers.append(out_blks)
    p["layers"] = layers
    ca = raw["coordatt"]
    cap = {}
    cap["conv1_wm"], cap["conv1_b"] = _fold_conv(ca["conv1_w"], bn=ca["bn1"], bias=ca["conv1_b"])
    cap["convh_wm"], cap["convh_b"] = _fold_conv(ca["convh_w"], bias=ca["convh_b"])
    cap["convw_wm"], cap["convw_b"] = _fold_conv(ca["convw_w"], bias=ca["convw_b"])
    p["coordatt"] = cap
    return p


# ----------------------------------------------------------------------------
# Full forward (CoordAtt_ResNet50, eval path) — wrapped in a single jax.jit
# ----------------------------------------------------------------------------

def coordatt_resnet50_forward(params, x):
    """x: (b, c, t, h, w) float32 video tensor (matches the PyTorch module input)."""
    b, c, t, h, w = x.shape
    x = jnp.transpose(x, (0, 2, 1, 3, 4)).reshape(b * t, c, h, w)   # (b*t, C, H, W)
    x = jnp.transpose(x, (0, 2, 3, 1))                               # NCHW -> NHWC

    # stem: conv1 (7x7/2, pad 3) + bn1 (reference forward has NO ReLU here) + maxpool
    x = conv2d(x, params["stem_wm"], params["stem_b"], ksize=7, stride=2, pad=3, act="none")
    x = maxpool3x3_s2(x)

    for li, (_, blocks, lstride) in enumerate(_LAYER_CFG):
        for bi in range(blocks):
            s = lstride if bi == 0 else 1
            x = bottleneck(x, params["layers"][li][bi], s)
            if li == 3 and bi == _INS4_IDX:
                x = coord_att(x, params["coordatt"])

    feat = gem_pool(x)                           # (b*t, 2048) fp32
    feat = feat.reshape(b, t, -1)
    feat = jnp.transpose(feat, (0, 2, 1))        # (b, 2048, t)
    return feat
    # TODO(synk): training branch (mean over t -> batch-stat BatchNorm1d -> Linear classifier)
    # not implemented; the reference eval forward returns the (b, 2048, t) features above.


# ----------------------------------------------------------------------------

if __name__ == "__main__":
    # self-check 1: single-K matmul path (bf16 MXU, relu epilogue) vs jnp reference
    a = jax.random.normal(jax.random.PRNGKey(1), (37, 200), jnp.float32)
    bmat = jax.random.normal(jax.random.PRNGKey(2), (200, 70), jnp.float32)
    bias = jax.random.normal(jax.random.PRNGKey(3), (70,), jnp.float32)
    wp1 = _prepare_weight(bmat)
    got = jax.jit(lambda a_, w_, c_: matmul_bias_act(a_, w_, c_, act="relu",
                                                     out_dtype=jnp.float32))(a, wp1, bias)
    want = jnp.maximum(a @ bmat + bias, 0.0)
    rel = float(jnp.linalg.norm(got - want) / (jnp.linalg.norm(want) + 1e-6))
    assert rel < 2e-2, rel

    # self-check 2: multi-K accumulation path (K large enough to exceed every stage budget)
    a2 = jax.random.normal(jax.random.PRNGKey(4), (300, 9000), jnp.float32)
    b2 = jax.random.normal(jax.random.PRNGKey(5), (9000, 600), jnp.float32)
    bias2 = jnp.zeros((600,), jnp.float32)
    wp2 = _prepare_weight(b2)
    got2 = jax.jit(lambda a_, w_, c_: matmul_bias_act(a_, w_, c_, act="none",
                                                      out_dtype=jnp.float32))(a2, wp2, bias2)
    want2 = a2 @ b2
    rel2 = float(jnp.linalg.norm(got2 - want2) / jnp.linalg.norm(want2))
    assert rel2 < 2e-2, rel2

    # deterministic inputs / params
    key = jax.random.PRNGKey(0)
    x = jax.random.normal(key, (2, 3, 2, 32, 32), jnp.float32)   # (b, c, t, h, w)
    raw_params = make_params(num_classes=10, seed=0)
    params = prepare_params(raw_params)          # one-time BN fold / pad / cast (outside jit)

    fwd = jax.jit(coordatt_resnet50_forward)
    out = jax.block_until_ready(fwd(params, x))

    assert out.shape == (2, 2048, 2), out.shape
    assert bool(jnp.all(jnp.isfinite(out)))
    print("KERNEL_OK")
</pallas_src>

<mosaic_0001>
module attributes {stable_mosaic.version = 11 : i64} {
  func.func @_matmul_single_kernel(%arg0: i32, %arg1: i32, %arg2: memref<40x256xbf16, #tpu.memory_space<vmem>>, %arg3: memref<256x128xbf16, #tpu.memory_space<vmem>>, %arg4: memref<1x128xf32, #tpu.memory_space<vmem>>, %arg5: memref<40x128xf32, #tpu.memory_space<vmem>>) attributes {dimension_semantics = [#tpu.dimension_semantics<parallel>, #tpu.dimension_semantics<parallel>], iteration_bounds = array<i64: 1, 1>, scalar_prefetch = 0 : i64, scratch_operands = 0 : i64, tpu.core_type = #tpu.core_type<tc>, window_params = [{transform_indices = @transform_0, window_bounds = array<i64: 40, 256>}, {transform_indices = @transform_1, window_bounds = array<i64: 256, 128>}, {transform_indices = @transform_2, window_bounds = array<i64: 1, 128>}, {transform_indices = @transform_3, window_bounds = array<i64: 40, 128>}]} {
    %c0 = arith.constant 0 : index
    %c0_0 = arith.constant 0 : index
    %0 = vector.load %arg2[%c0, %c0_0] : memref<40x256xbf16, #tpu.memory_space<vmem>>, vector<40x256xbf16>
    %c0_1 = arith.constant 0 : index
    %c0_2 = arith.constant 0 : index
    %1 = vector.load %arg3[%c0_1, %c0_2] : memref<256x128xbf16, #tpu.memory_space<vmem>>, vector<256x128xbf16>
    %cst = arith.constant dense<0.000000e+00> : vector<40x128xf32>
    %2 = tpu.matmul %0, %1, %cst {dimension_numbers = #tpu.dot_dimension_numbers<[1], [0], [0], [1], [0, 0, 1, 1], [], []>} : vector<40x256xbf16>, vector<256x128xbf16>, vector<40x128xf32> -> vector<40x128xf32>
    %c0_3 = arith.constant 0 : index
    %c0_4 = arith.constant 0 : index
    %3 = vector.load %arg4[%c0_3, %c0_4] : memref<1x128xf32, #tpu.memory_space<vmem>>, vector<1x128xf32>
    %4 = vector.broadcast %3 : vector<1x128xf32> to vector<40x128xf32>
    %5 = arith.addf %2, %4 : vector<40x128xf32>
    %cst_5 = arith.constant 0.000000e+00 : f32
    %6 = vector.broadcast %cst_5 : f32 to vector<40x128xf32>
    %7 = arith.maximumf %5, %6 : vector<40x128xf32>
    %c0_6 = arith.constant 0 : index
    %c0_7 = arith.constant 0 : index
    %8 = vector.load %arg5[%c0_6, %c0_7] : memref<40x128xf32, #tpu.memory_space<vmem>>, vector<40x128xf32>
    tpu.vector_store %arg5[%c0_6, %c0_7], %7 {strides = array<i32>} : memref<40x128xf32, #tpu.memory_space<vmem>>, vector<40x128xf32>,
    return
  }
  func.func @transform_0(%arg0: i32, %arg1: i32) -> (i32, i32) {
    %c0_i32 = arith.constant 0 : i32
    %c0_i32_0 = arith.constant 0 : i32
    return %arg0, %c0_i32 : i32, i32
  }
  func.func @transform_1(%arg0: i32, %arg1: i32) -> (i32, i32) {
    %c0_i32 = arith.constant 0 : i32
    %c0_i32_0 = arith.constant 0 : i32
    return %c0_i32, %arg1 : i32, i32
  }
  func.func @transform_2(%arg0: i32, %arg1: i32) -> (i32, i32) {
    %c0_i32 = arith.constant 0 : i32
    %c0_i32_0 = arith.constant 0 : i32
    return %c0_i32, %arg1 : i32, i32
  }
  func.func @transform_3(%arg0: i32, %arg1: i32) -> (i32, i32) {
    %c0_i32 = arith.constant 0 : i32
    return %arg0, %arg1 : i32, i32
  }
}

</mosaic_0001>

<llo_original>
// kernel: _lambda_.1
$region0: #{_lambda_.1}
  #allocation0 [shape = 'u32[]', space=smem, size = 0x4, offset = 0x4, fixed_abs, tag = 'smem constant byte address 0x4 - core index']
  #allocation1 [shape = 'u32[144,128]{1,0:T(1,128)}', space=vmem, size = 0x12000, scoped, tag = 'internal scratch']
  %s0 = inlined_call_operand.vmem [shape: bf16[40,256], index: 0, kind: input, shape index: {}]
  %s1 = inlined_call_operand.vmem [shape: bf16[256,128], index: 1, kind: input, shape index: {}]
  %s2 = inlined_call_operand.vmem [shape: f32[1,128], index: 2, kind: input, shape index: {}]
  %s3 = inlined_call_operand.hbm [shape: f32[40,128], index: 3, kind: output, shape index: {}]
  %s4 = sld [smem:[#allocation0]]
  $region22: #{_lambda_.1} parent=0
    _
  %s6 = ssub.s32 1, %s4
  %s7 = scalar_select 0, %s6, %s4
  $region1: #{_lambda_.1} parent=0
    #allocation2 [shape = 'u8[20480]{0}', space=vmem, size = 0x5000, scoped, tag = 'output window, operand 0, single buffered']
    #allocation3 [shape = 's32[1]{0}', space=sflag, size = 0x4, scoped, tag = 'scoped memory for _lambda_.1']
    %8 = vsyncpa [#allocation3], 0
    // Predicated region
    $region2: #{_lambda_.1} parent=1 // pred_check
      _
    $region3: #{_lambda_.1} parent=1 // pred_check_branch
      %10 = sbr.rel (0) target = $region5
    $region4: #{_lambda_.1} parent=1 // pred_region
      _
    $region5: #{_lambda_.1} parent=1 // pred_fallthru
      _
    // Predicated region
    $region6: #{_lambda_.1} parent=1 // pred_check
      _
    $region7: #{_lambda_.1} parent=1 // pred_check_branch
      %12 = sbr.rel (0) target = $region9
    $region8: #{_lambda_.1} parent=1 // pred_region
      _
    $region9: #{_lambda_.1} parent=1 // pred_fallthru
      _
    // Predicated region
    $region10: #{_lambda_.1} parent=1 // pred_check
      _
    $region11: #{_lambda_.1} parent=1 // pred_check_branch
      %14 = sbr.rel (0) target = $region13
    $region12: #{_lambda_.1} parent=1 // pred_region
      _
    $region13: #{_lambda_.1} parent=1 // pred_fallthru
      _
    %v16 = vld [vmem:[%s0] sm:$0xff]
    %v17 = vld [vmem:[%s0 + $0x8] sm:$0xff]
    %v18 = vld [vmem:[%s0 + $0x10] sm:$0xff]
    %v19 = vld [vmem:[%s0 + $0x18] sm:$0xff]
    %v20 = vld [vmem:[%s0 + $0x20] sm:$0xff]
    %v21 = vld [vmem:[%s1] sm:$0xf]
    %v22 = vld [vmem:[%s1 + $0x4] sm:$0xf]
    %v23 = vld [vmem:[%s1 + $0x8] sm:$0xf]
    %v24 = vld [vmem:[%s1 + $0xc] sm:$0xf]
    %v25 = vld [vmem:[%s1 + $0x10] sm:$0xf]
    %v26 = vld [vmem:[%s1 + $0x14] sm:$0xf]
    %v27 = vld [vmem:[%s1 + $0x18] sm:$0xf]
    %v28 = vld [vmem:[%s1 + $0x1c] sm:$0xf]
    %v29 = vld [vmem:[%s1 + $0x20] sm:$0xf]
    %v30 = vld [vmem:[%s1 + $0x24] sm:$0xf]
    %v31 = vld [vmem:[%s1 + $0x28] sm:$0xf]
    %v32 = vld [vmem:[%s1 + $0x2c] sm:$0xf]
    %v33 = vld [vmem:[%s1 + $0x30] sm:$0xf]
    %v34 = vld [vmem:[%s1 + $0x34] sm:$0xf]
    %v35 = vld [vmem:[%s1 + $0x38] sm:$0xf]
    %v36 = vld [vmem:[%s1 + $0x3c] sm:$0xf]
    %v37 = vld [vmem:[%s1 + $0x40] sm:$0xf]
    %v38 = vld [vmem:[%s1 + $0x44] sm:$0xf]
    %v39 = vld [vmem:[%s1 + $0x48] sm:$0xf]
    %v40 = vld [vmem:[%s1 + $0x4c] sm:$0xf]
    %v41 = vld [vmem:[%s1 + $0x50] sm:$0xf]
    %v42 = vld [vmem:[%s1 + $0x54] sm:$0xf]
    %v43 = vld [vmem:[%s1 + $0x58] sm:$0xf]
    %v44 = vld [vmem:[%s1 + $0x5c] sm:$0xf]
    %v45 = vld [vmem:[%s1 + $0x60] sm:$0xf]
    %v46 = vld [vmem:[%s1 + $0x64] sm:$0xf]
    %v47 = vld [vmem:[%s1 + $0x68] sm:$0xf]
    %v48 = vld [vmem:[%s1 + $0x6c] sm:$0xf]
    %v49 = vld [vmem:[%s1 + $0x70] sm:$0xf]
    %v50 = vld [vmem:[%s1 + $0x74] sm:$0xf]
    %v51 = vld [vmem:[%s1 + $0x78] sm:$0xf]
    %v52 = vld [vmem:[%s1 + $0x7c] sm:$0xf]
    %v53 = vld [vmem:[%s2] sm:$0x1]
    %v55 = vlaneseq
    %v56 = vshrl.u32 %v55, 7
    %v57 = vsub.s32 0, %v56
    %v58 = vrot.slane %v53, %v57
    %v65 = vunpack.c.l.b16 %v16
    %v66 = vunpack.c.h.b16 %v16
    %v67 = vunpack.c.l.b16 %v17
    %v68 = vunpack.c.h.b16 %v17
    %v69 = vunpack.c.l.b16 %v18
    %v70 = vunpack.c.h.b16 %v18
    %v71 = vunpack.c.l.b16 %v19
    %v72 = vunpack.c.h.b16 %v19
    %v73 = vunpack.c.l.b16 %v20
    %v74 = vunpack.c.h.b16 %v20
    %v75 = vpack.c.b16 %v67, %v65
    %v76 = vpack.c.b16 %v68, %v66
    %v77 = vpack.c.b16 %v71, %v69
    %v78 = vpack.c.b16 %v72, %v70
    %v79 = vpack.c.b16 %v73, %v73
    %v80 = vpack.c.b16 %v74, %v74
    %v119 = vunpack.c.l.b16 %v21
    %v120 = vunpack.c.l.b16 %v22
    %v121 = vunpack.c.l.b16 %v23
    %v122 = vunpack.c.l.b16 %v24
    %v123 = vunpack.c.l.b16 %v25
    %v124 = vunpack.c.l.b16 %v26
    %v125 = vunpack.c.l.b16 %v27
    %v126 = vunpack.c.l.b16 %v28
    %v127 = vunpack.c.l.b16 %v29
    %v128 = vunpack.c.l.b16 %v30
    %v129 = vunpack.c.l.b16 %v31
    %v130 = vunpack.c.l.b16 %v32
    %v131 = vunpack.c.l.b16 %v33
    %v132 = vunpack.c.l.b16 %v34
    %v133 = vunpack.c.l.b16 %v35
    %v134 = vunpack.c.l.b16 %v36
    %v135 = vunpack.c.l.b16 %v37
    %v136 = vunpack.c.l.b16 %v38
    %v137 = vunpack.c.l.b16 %v39
    %v138 = vunpack.c.l.b16 %v40
    %v139 = vunpack.c.l.b16 %v41
    %v140 = vunpack.c.l.b16 %v42
    %v141 = vunpack.c.l.b16 %v43
    %v142 = vunpack.c.l.b16 %v44
    %v143 = vunpack.c.l.b16 %v45
    %v144 = vunpack.c.l.b16 %v46
    %v145 = vunpack.c.l.b16 %v47
    %v146 = vunpack.c.l.b16 %v48
    %v147 = vunpack.c.l.b16 %v49
    %v148 = vunpack.c.l.b16 %v50
    %v149 = vunpack.c.l.b16 %v51
    %v150 = vunpack.c.l.b16 %v52
    %v151 = vpack.c.b16 %v120, %v119
    %v152 = vpack.c.b16 %v122, %v121
    %v153 = vpack.c.b16 %v124, %v123
    %v154 = vpack.c.b16 %v126, %v125
    %v155 = vpack.c.b16 %v128, %v127
    %v156 = vpack.c.b16 %v130, %v129
    %v157 = vpack.c.b16 %v132, %v131
    %v158 = vpack.c.b16 %v134, %v133
    %v159 = vpack.c.b16 %v136, %v135
    %v160 = vpack.c.b16 %v138, %v137
    %v161 = vpack.c.b16 %v140, %v139
    %v162 = vpack.c.b16 %v142, %v141
    %v163 = vpack.c.b16 %v144, %v143
    %v164 = vpack.c.b16 %v146, %v145
    %v165 = vpack.c.b16 %v148, %v147
    %v166 = vpack.c.b16 %v150, %v149
    %183 = vmatprep.subr.bf16.mxu0 0
    %184 = vmatpush1.bf16.msra.mxu0 %v158
    %185 = vmatprep.subr.bf16.mxu0 0
    %186 = vmatpush1.bf16.msra.mxu0 %v157
    %187 = vmatprep.subr.bf16.mxu0 0
    %188 = vmatpush1.bf16.msra.mxu0 %v156
    %189 = vmatprep.subr.bf16.mxu0 0
    %190 = vmatpush1.bf16.msra.mxu0 %v155
    %191 = vmatprep.subr.bf16.mxu0 0
    %192 = vmatpush1.bf16.msra.mxu0 %v154
    %193 = vmatprep.subr.bf16.mxu0 0
    %194 = vmatpush1.bf16.msra.mxu0 %v153
    %195 = vmatprep.subr.bf16.mxu0 0
    %196 = vmatpush1.bf16.msra.mxu0 %v152
    %197 = vmatprep.subr.bf16.mxu0 0
    %198 = vmatpush1.bf16.msra.mxu0 %v151
    %199 = vmatprep.subr.bf16.mxu0 0
    %200 = vmatpush2.bf16.msra.mxu0 %v166
    %201 = vmatprep.subr.bf16.mxu0 0
    %202 = vmatpush2.bf16.msra.mxu0 %v165
    %203 = vmatprep.subr.bf16.mxu0 0
    %204 = vmatpush2.bf16.msra.mxu0 %v164
    %205 = vmatprep.subr.bf16.mxu0 0
    %206 = vmatpush2.bf16.msra.mxu0 %v163
    %207 = vmatprep.subr.bf16.mxu0 0
    %208 = vmatpush2.bf16.msra.mxu0 %v162
    %209 = vmatprep.subr.bf16.mxu0 0
    %210 = vmatpush2.bf16.msra.mxu0 %v161
    %211 = vmatprep.subr.bf16.mxu0 0
    %212 = vmatpush2.bf16.msra.mxu0 %v160
    %213 = vmatprep.subr.bf16.mxu0 0
    %214 = vmatpush2.bf16.msra.mxu0 %v159
    %215 = vmatprep.mubr.bf16.mxu0 %v76
    %216 = vmatmul.mubr.bf16.gmra.mxu0 %v75
    %v217 = vpop.f32.mrf.mxu0
    %v218 = vadd.f32 %v58, %v217
    %v219 = vpop.f32.mrf.mxu0
    %v220 = vpop.f32.mrf.mxu0
    %v221 = vadd.f32 %v58, %v220
    %v222 = vpop.f32.mrf.mxu0
    %223 = vmatprep.mubr.bf16.mxu0 %v78
    %224 = vmatmul.mubr.bf16.gmra.mxu0 %v77
    %v225 = vpop.f32.mrf.mxu0
    %v226 = vadd.f32 %v58, %v225
    %v227 = vpop.f32.mrf.mxu0
    %v228 = vpop.f32.mrf.mxu0
    %v229 = vadd.f32 %v58, %v228
    %v230 = vpop.f32.mrf.mxu0
    %231 = vmatprep.mubr.bf16.mxu0 %v80
    %232 = vmatmul.mubr.bf16.gmra.mxu0 %v79
    %v233 = vpop.f32.mrf.mxu0
    %v234 = vadd.f32 %v58, %v233
    %v235 = vpop.f32.mrf.mxu0
    %v236 = vpop.f32.mrf.mxu0
    %v237 = vpop.f32.mrf.mxu0
    %238 = vdwg.mxu0
    %v239 = vmax.f32 %v218, 0.0
    %v240 = vmax.f32 %v221, 0.0
    %v241 = vmax.f32 %v226, 0.0
    %v242 = vmax.f32 %v229, 0.0
    %v243 = vmax.f32 %v234, 0.0
    %244 = vst [vmem:[#allocation2] sm:$0xff] %v239
    %245 = vst [vmem:[#allocation2 + $0x8] sm:$0xff] %v240
    %246 = vst [vmem:[#allocation2 + $0x10] sm:$0xff] %v241
    %247 = vst [vmem:[#allocation2 + $0x18] sm:$0xff] %v242
    %248 = vst [vmem:[#allocation2 + $0x20] sm:$0xff] %v243
    // Predicated region
    $region14: #{_lambda_.1} parent=1 // pred_check
      _
    $region15: #{_lambda_.1} parent=1 // pred_check_branch
      %250 = sbr.rel (0) target = $region17
    $region16: #{_lambda_.1} parent=1 // pred_region
      %s252 = ssub.s32 640, 640
      %253 = vsyncadd [#allocation3], %s252
      %s254 = sshll.u32 [#allocation2], 4
      %s255 = int_to_ptr.vmem [resolvable:$true] %s254
      %260 = dma.vmem_to_hbm [thread:$0]  %s255, 640, %s3, [#allocation3], 128, 128, 8
    $region17: #{_lambda_.1} parent=1 // pred_fallthru
      _
    // Predicated region
    $region18: #{_lambda_.1} parent=1 // pred_check
      _
    $region19: #{_lambda_.1} parent=1 // pred_check_branch
      %262 = sbr.rel (0) target = $region21
    $region20: #{_lambda_.1} parent=1 // pred_region
      %263 = dma.done [#allocation3], 640
    $region21: #{_lambda_.1} parent=1 // pred_fallthru
      _
    %264 = vsyncpa [#allocation3], 1

</llo_original>
